<compile_context>
chip_gen: v7x
topology: tpu7x:2x2x1
jax: 0.10.0
libtpu: 0.0.40
codegen_flags: <defaults>
</compile_context>

<pallas_src>
import functools

import jax
import jax.numpy as jnp
from jax.experimental import pallas as pl
from jax.experimental.pallas import tpu as pltpu

NUM_ATTR = 8   # PyTorch default is 40; kept small per instructions
BATCH = 2

_TM_CAP = 8192   # max batch elements (lanes) per grid step


def _round_up(x, m):
    return (x + m - 1) // m * m


def _cond_embed_kernel(xT_ref, epsT_ref, w_ref, b_ref, out_ref):
    """Fused, transposed (batch-on-lanes) condition embedding.

    xT_ref   : (A,  tm)   x^T block
    epsT_ref : (A,  tm)   eps^T block
    w_ref    : (2A, A)    nn.Linear weight (PyTorch out x in layout -> LHS of e^T = W x^T)
    b_ref    : (2A, 1)    bias, broadcast along lanes
    out_ref  : (3A, tm)   packed [attr ; mu ; logvar]
    """
    A = xT_ref.shape[0]
    # e^T = relu(W @ x^T + b)  -> one MXU matmul for both mu and logvar halves
    e = jnp.dot(w_ref[...], xT_ref[...], preferred_element_type=jnp.float32) + b_ref[...]
    e = jnp.maximum(e, 0.0)
    mu = e[:A, :]          # sublane-aligned slices (A is a multiple of 8 here: 8)
    lv = e[A:, :]
    attr = epsT_ref[...] * jnp.exp(0.5 * lv) + mu
    out_ref[0 * A:1 * A, :] = attr
    out_ref[1 * A:2 * A, :] = mu
    out_ref[2 * A:3 * A, :] = lv


def condition_embedding(x, w, b, eps, *, num_attr):
    """Condition_Embedding.forward.

    x:   (N, A)   attribute vectors
    w:   (2A, A)  nn.Linear weight (PyTorch layout: out_features x in_features)
    b:   (2A,)    nn.Linear bias
    eps: (N, A)   standard-normal noise for the reparameterization trick
    returns (attr_code, mu, logvar), each (N, A) float32
    """
    N, A = x.shape
    assert A == num_attr and w.shape == (2 * A, A) and b.shape == (2 * A,)

    # Transposed (lane-dense) operands: batch goes on lanes, features on sublanes.
    xT = x.T.astype(jnp.float32)                       # (A, N)
    epsT = eps.T.astype(jnp.float32)                   # (A, N)
    w32 = w.astype(jnp.float32)                        # (2A, A)
    b2 = b.reshape(2 * A, 1).astype(jnp.float32)       # (2A, 1)

    # Lane (batch) tiling:
    #  * tiny batches -> a single exact block (block dims equal the full array dims).
    #  * larger batches -> 128-aligned lane tiles; keep >= 2 grid steps when possible so
    #    the "parallel" axis can shard across two TensorCores (v7x megacore).
    if N <= 128:
        tm, Np = N, N
    else:
        tm = min(_TM_CAP, _round_up((N + 1) // 2, 128))
        Np = _round_up(N, tm)
        xT = jnp.pad(xT, ((0, 0), (0, Np - N)))
        epsT = jnp.pad(epsT, ((0, 0), (0, Np - N)))

    col_in_spec = pl.BlockSpec((A, tm), lambda i: (0, i))
    out_spec = pl.BlockSpec((3 * A, tm), lambda i: (0, i))
    w_spec = pl.BlockSpec((2 * A, A), lambda i: (0, 0))
    b_spec = pl.BlockSpec((2 * A, 1), lambda i: (0, 0))

    out = pl.pallas_call(
        _cond_embed_kernel,
        out_shape=jax.ShapeDtypeStruct((3 * A, Np), jnp.float32),
        grid_spec=pltpu.PrefetchScalarGridSpec(
            num_scalar_prefetch=0,
            grid=(Np // tm,),
            in_specs=[col_in_spec, col_in_spec, w_spec, b_spec],
            out_specs=out_spec,
        ),
        compiler_params=pltpu.CompilerParams(
            dimension_semantics=("parallel",),
            vmem_limit_bytes=32 << 20,   # safe on v5e (16 MiB default) through v7x (64 MiB phys)
        ),
    )(xT, epsT, w32, b2)

    # Unpack the single output slab and undo the transpose (layout plumbing only).
    attr_code = out[0 * A:1 * A, :N].T
    mu = out[1 * A:2 * A, :N].T
    logvar = out[2 * A:3 * A, :N].T
    return attr_code, mu, logvar


if __name__ == "__main__":
    key = jax.random.PRNGKey(0)
    kx, kw, kb, ke = jax.random.split(key, 4)

    x = jax.random.normal(kx, (BATCH, NUM_ATTR), jnp.float32)                # attributes
    w = 0.1 * jax.random.normal(kw, (2 * NUM_ATTR, NUM_ATTR), jnp.float32)   # Linear weight
    b = 0.1 * jax.random.normal(kb, (2 * NUM_ATTR,), jnp.float32)            # Linear bias
    # torch.cuda.FloatTensor(std.size()).normal_() -> deterministic host-side N(0,1) noise
    eps = jax.random.normal(ke, (BATCH, NUM_ATTR), jnp.float32)

    fwd = jax.jit(functools.partial(condition_embedding, num_attr=NUM_ATTR))
    attr_code, mu, logvar = fwd(x, w, b, eps)
    jax.block_until_ready((attr_code, mu, logvar))

    # plain-JAX reference check of the fused kernel
    e_ref = jnp.maximum(x @ w.T + b, 0.0)
    mu_ref, lv_ref = e_ref[:, :NUM_ATTR], e_ref[:, NUM_ATTR:]
    attr_ref = eps * jnp.exp(0.5 * lv_ref) + mu_ref

    assert attr_code.shape == (BATCH, NUM_ATTR)
    assert mu.shape == (BATCH, NUM_ATTR) and logvar.shape == (BATCH, NUM_ATTR)
    assert bool(jnp.all(jnp.isfinite(attr_code)))
    assert bool(jnp.allclose(mu, mu_ref, atol=1e-5, rtol=1e-5))
    assert bool(jnp.allclose(logvar, lv_ref, atol=1e-5, rtol=1e-5))
    assert bool(jnp.allclose(attr_code, attr_ref, atol=1e-5, rtol=1e-5))
    print("KERNEL_OK")
</pallas_src>

<mosaic_0001>
module attributes {stable_mosaic.version = 11 : i64} {
  func.func @_cond_embed_kernel(%arg0: i32, %arg1: memref<8x2xf32, #tpu.memory_space<vmem>>, %arg2: memref<8x2xf32, #tpu.memory_space<vmem>>, %arg3: memref<16x8xf32, #tpu.memory_space<vmem>>, %arg4: memref<16x1xf32, #tpu.memory_space<vmem>>, %arg5: memref<24x2xf32, #tpu.memory_space<vmem>>) attributes {dimension_semantics = [#tpu.dimension_semantics<parallel>], iteration_bounds = array<i64: 1>, scalar_prefetch = 0 : i64, scratch_operands = 0 : i64, tpu.core_type = #tpu.core_type<tc>, window_params = [{transform_indices = @transform_0, window_bounds = array<i64: 8, 2>}, {transform_indices = @transform_1, window_bounds = array<i64: 8, 2>}, {pipeline_mode = #tpu.pipeline_mode<synchronous>, transform_indices = @transform_2, window_bounds = array<i64: 16, 8>}, {pipeline_mode = #tpu.pipeline_mode<synchronous>, transform_indices = @transform_3, window_bounds = array<i64: 16, 1>}, {transform_indices = @transform_4, window_bounds = array<i64: 24, 2>}]} {
    %c0 = arith.constant 0 : index
    %c0_0 = arith.constant 0 : index
    %0 = vector.load %arg3[%c0, %c0_0] : memref<16x8xf32, #tpu.memory_space<vmem>>, vector<16x8xf32>
    %c0_1 = arith.constant 0 : index
    %c0_2 = arith.constant 0 : index
    %1 = vector.load %arg1[%c0_1, %c0_2] : memref<8x2xf32, #tpu.memory_space<vmem>>, vector<8x2xf32>
    %cst = arith.constant dense<0.000000e+00> : vector<16x2xf32>
    %2 = tpu.matmul %0, %1, %cst {dimension_numbers = #tpu.dot_dimension_numbers<[1], [0], [0], [1], [0, 0, 1, 1], [], []>} : vector<16x8xf32>, vector<8x2xf32>, vector<16x2xf32> -> vector<16x2xf32>
    %c0_3 = arith.constant 0 : index
    %c0_4 = arith.constant 0 : index
    %3 = vector.load %arg4[%c0_3, %c0_4] : memref<16x1xf32, #tpu.memory_space<vmem>>, vector<16x1xf32>
    %4 = vector.broadcast %3 : vector<16x1xf32> to vector<16x2xf32>
    %5 = arith.addf %2, %4 : vector<16x2xf32>
    %cst_5 = arith.constant 0.000000e+00 : f32
    %6 = vector.broadcast %cst_5 : f32 to vector<16x2xf32>
    %7 = arith.maximumf %5, %6 : vector<16x2xf32>
    %8 = vector.extract_strided_slice %7 {offsets = [0, 0], sizes = [8, 2], strides = [1, 1]} : vector<16x2xf32> to vector<8x2xf32>
    %9 = vector.extract_strided_slice %7 {offsets = [8, 0], sizes = [8, 2], strides = [1, 1]} : vector<16x2xf32> to vector<8x2xf32>
    %c0_6 = arith.constant 0 : index
    %c0_7 = arith.constant 0 : index
    %10 = vector.load %arg2[%c0_6, %c0_7] : memref<8x2xf32, #tpu.memory_space<vmem>>, vector<8x2xf32>
    %cst_8 = arith.constant 5.000000e-01 : f32
    %11 = vector.broadcast %cst_8 : f32 to vector<8x2xf32>
    %12 = arith.mulf %11, %9 : vector<8x2xf32>
    %13 = math.exp %12 : vector<8x2xf32>
    %14 = arith.mulf %10, %13 : vector<8x2xf32>
    %15 = arith.addf %14, %8 : vector<8x2xf32>
    %c0_9 = arith.constant 0 : index
    %c0_10 = arith.constant 0 : index
    %16 = vector.load %arg5[%c0_9, %c0_10] : memref<24x2xf32, #tpu.memory_space<vmem>>, vector<8x2xf32>
    tpu.vector_store %arg5[%c0_9, %c0_10], %15 {strides = array<i32>} : memref<24x2xf32, #tpu.memory_space<vmem>>, vector<8x2xf32>,
    %c8 = arith.constant 8 : index
    %c0_11 = arith.constant 0 : index
    %17 = vector.load %arg5[%c8, %c0_11] : memref<24x2xf32, #tpu.memory_space<vmem>>, vector<8x2xf32>
    tpu.vector_store %arg5[%c8, %c0_11], %8 {strides = array<i32>} : memref<24x2xf32, #tpu.memory_space<vmem>>, vector<8x2xf32>,
    %c16 = arith.constant 16 : index
    %c0_12 = arith.constant 0 : index
    %18 = vector.load %arg5[%c16, %c0_12] : memref<24x2xf32, #tpu.memory_space<vmem>>, vector<8x2xf32>
    tpu.vector_store %arg5[%c16, %c0_12], %9 {strides = array<i32>} : memref<24x2xf32, #tpu.memory_space<vmem>>, vector<8x2xf32>,
    return
  }
  func.func @transform_0(%arg0: i32) -> (i32, i32) {
    %c0_i32 = arith.constant 0 : i32
    %c0_i32_0 = arith.constant 0 : i32
    return %c0_i32, %arg0 : i32, i32
  }
  func.func @transform_1(%arg0: i32) -> (i32, i32) {
    %c0_i32 = arith.constant 0 : i32
    %c0_i32_0 = arith.constant 0 : i32
    return %c0_i32, %arg0 : i32, i32
  }
  func.func @transform_2(%arg0: i32) -> (i32, i32) {
    %c0_i32 = arith.constant 0 : i32
    %c0_i32_0 = arith.constant 0 : i32
    %c0_i32_1 = arith.constant 0 : i32
    return %c0_i32, %c0_i32_0 : i32, i32
  }
  func.func @transform_3(%arg0: i32) -> (i32, i32) {
    %c0_i32 = arith.constant 0 : i32
    %c0_i32_0 = arith.constant 0 : i32
    %c0_i32_1 = arith.constant 0 : i32
    return %c0_i32, %c0_i32_0 : i32, i32
  }
  func.func @transform_4(%arg0: i32) -> (i32, i32) {
    %c0_i32 = arith.constant 0 : i32
    %c0_i32_0 = arith.constant 0 : i32
    return %c0_i32, %arg0 : i32, i32
  }
}

</mosaic_0001>

<llo_original>
// kernel: condition_embedding.1
$region0: #{condition_embedding.1}
  #allocation0 [shape = 'u32[]', space=smem, size = 0x4, offset = 0x4, fixed_abs, tag = 'smem constant byte address 0x4 - core index']
  #allocation1 [shape = 'u32[144,128]{1,0:T(1,128)}', space=vmem, size = 0x12000, scoped, tag = 'internal scratch']
  %s0 = inlined_call_operand.vmem [shape: f32[8,2], index: 0, kind: input, shape index: {}]
  %s1 = inlined_call_operand.vmem [shape: f32[8,2], index: 1, kind: input, shape index: {}]
  %s2 = inlined_call_operand.vmem [shape: f32[16,8], index: 2, kind: input, shape index: {}]
  %s3 = inlined_call_operand.vmem [shape: f32[16,1], index: 3, kind: input, shape index: {}]
  %s4 = inlined_call_operand.vmem [shape: f32[24,2], index: 4, kind: output, shape index: {}]
  %s5 = sld [smem:[#allocation0]]
  $region26: #{condition_embedding.1} parent=0
    _
  %s7 = ssub.s32 1, %s5
  %s8 = scalar_select 0, %s7, %s5
  // Predicated region
  $region2: #{condition_embedding.1} parent=0 // pred_check
    _
  $region3: #{condition_embedding.1} parent=0 // pred_check_branch
    %10 = sbr.rel (0) target = $region5
  $region4: #{condition_embedding.1} parent=0 // pred_region
    _
  $region5: #{condition_embedding.1} parent=0 // pred_fallthru
    _
  // Predicated region
  $region6: #{condition_embedding.1} parent=0 // pred_check
    _
  $region7: #{condition_embedding.1} parent=0 // pred_check_branch
    %12 = sbr.rel (0) target = $region9
  $region8: #{condition_embedding.1} parent=0 // pred_region
    _
  $region9: #{condition_embedding.1} parent=0 // pred_fallthru
    _
  // Predicated region
  $region10: #{condition_embedding.1} parent=0 // pred_check
    _
  $region11: #{condition_embedding.1} parent=0 // pred_check_branch
    %14 = sbr.rel (0) target = $region13
  $region12: #{condition_embedding.1} parent=0 // pred_region
    _
  $region13: #{condition_embedding.1} parent=0 // pred_fallthru
    _
  // Predicated region
  $region14: #{condition_embedding.1} parent=0 // pred_check
    _
  $region15: #{condition_embedding.1} parent=0 // pred_check_branch
    %16 = sbr.rel (0) target = $region17
  $region16: #{condition_embedding.1} parent=0 // pred_region
    _
  $region17: #{condition_embedding.1} parent=0 // pred_fallthru
    _
  %v17 = vld [vmem:[%s2] sm:$0xff]
  %v18 = vld [vmem:[%s2 + $0x8] sm:$0xff]
  %v19 = vld [vmem:[%s0] sm:$0xff]
  %v20 = vld [vmem:[%s3] sm:$0xff]
  %v21 = vld [vmem:[%s3 + $0x8] sm:$0xff]
  %23 = vset.pattern.permute.xlu0 0
  %24 = vperm.xlu0 %23, %v20
  %v25 = vpop.permute.xlu0 %24
  %28 = vset.pattern.permute.xlu0 0
  %29 = vperm.xlu0 %28, %v21
  %v30 = vpop.permute.xlu0 %29
  %vm32 = vcmask 64512
  %v34 = vsel %vm32, %v17, 0
  %v37 = vsel %vm32, %v18, 0
  %39 = vmatprep.subr.mxu0 0.0
  %40 = vmatpush1.msra.mxu0 %v19
  %41 = vmatprep.subr.mxu0 0.0
  %42 = vmatpush1.msra.mxu0 0.0
  %43 = vmatprep.subr.mxu0 0.0
  %44 = vmatpush1.msra.mxu0 0.0
  %45 = vmatprep.subr.mxu0 0.0
  %46 = vmatpush1.msra.mxu0 0.0
  %47 = vmatprep.subr.mxu0 0.0
  %48 = vmatpush1.msra.mxu0 0.0
  %49 = vmatprep.subr.mxu0 0.0
  %50 = vmatpush1.msra.mxu0 0.0
  %51 = vmatprep.subr.mxu0 0.0
  %52 = vmatpush1.msra.mxu0 0.0
  %53 = vmatprep.subr.mxu0 0.0
  %54 = vmatpush1.msra.mxu0 0.0
  %55 = vmatprep.subr.mxu0 0.0
  %56 = vmatpush1.msra.mxu0 0.0
  %57 = vmatprep.subr.mxu0 0.0
  %58 = vmatpush1.msra.mxu0 0.0
  %59 = vmatprep.subr.mxu0 0.0
  %60 = vmatpush1.msra.mxu0 0.0
  %61 = vmatprep.subr.mxu0 0.0
  %62 = vmatpush1.msra.mxu0 0.0
  %63 = vmatprep.subr.mxu0 0.0
  %64 = vmatpush1.msra.mxu0 0.0
  %65 = vmatprep.subr.mxu0 0.0
  %66 = vmatpush1.msra.mxu0 0.0
  %67 = vmatprep.subr.mxu0 0.0
  %68 = vmatpush1.msra.mxu0 0.0
  %69 = vmatprep.subr.mxu0 0.0
  %70 = vmatpush1.msra.mxu0 0.0
  %71 = vmatprep.subr.mxu0 0.0
  %72 = vmatpush1.msra.mxu0 0.0
  %73 = vmatprep.subr.mxu0 0.0
  %74 = vmatpush1.msra.mxu0 0.0
  %75 = vmatprep.subr.mxu0 0.0
  %76 = vmatpush1.msra.mxu0 0.0
  %77 = vmatprep.subr.mxu0 0.0
  %78 = vmatpush1.msra.mxu0 0.0
  %79 = vmatprep.subr.mxu0 0.0
  %80 = vmatpush1.msra.mxu0 0.0
  %81 = vmatprep.subr.mxu0 0.0
  %82 = vmatpush1.msra.mxu0 0.0
  %83 = vmatprep.subr.mxu0 0.0
  %84 = vmatpush1.msra.mxu0 0.0
  %85 = vmatprep.subr.mxu0 0.0
  %86 = vmatpush1.msra.mxu0 0.0
  %87 = vmatprep.subr.mxu0 0.0
  %88 = vmatpush1.msra.mxu0 0.0
  %89 = vmatprep.subr.mxu0 0.0
  %90 = vmatpush1.msra.mxu0 0.0
  %91 = vmatprep.subr.mxu0 0.0
  %92 = vmatpush1.msra.mxu0 0.0
  %93 = vmatprep.subr.mxu0 0.0
  %94 = vmatpush1.msra.mxu0 0.0
  %95 = vmatprep.subr.mxu0 0.0
  %96 = vmatpush1.msra.mxu0 0.0
  %97 = vmatprep.subr.mxu0 0.0
  %98 = vmatpush1.msra.mxu0 0.0
  %99 = vmatprep.subr.mxu0 0.0
  %100 = vmatpush1.msra.mxu0 0.0
  %101 = vmatprep.subr.mxu0 0.0
  %102 = vmatpush1.msra.mxu0 0.0
  %103 = vmatprep.mubr.f32.mxu0 0.0
  %104 = vmatmul.mubr.f32.gmra.mrb[0].mxu0 %v34
  %v105 = vpop.f32.mrb[0].mxu0
  %v106 = vadd.f32 %v25, %v105
  %v107 = vpop.f32.mrb[0].mxu0
  %108 = vmatprep.mubr.f32.mxu0 0.0
  %109 = vmatmul.mubr.f32.gmra.mrb[0].mxu0 %v37
  %v110 = vpop.f32.mrb[0].mxu0
  %v111 = vadd.f32 %v30, %v110
  %v112 = vpop.f32.mrb[0].mxu0
  %113 = vdwg.mxu0
  %v114 = vmax.f32 %v106, 0.0
  %v115 = vmax.f32 %v111, 0.0
  %v116 = vld [vmem:[%s1] sm:$0xff]
  %v117 = vmul.f32 %v115, 0.5
  %v118 = vmul.f32 %v117, 1.442695
  %v119 = vpow.pop %v118
  %v120 = vmul.f32 %v116, %v119
  %v121 = vadd.f32 %v120, %v114
  %vm122 = vcmask 15360
  %123 = vst.msk [vmem:[%s4] sm:$0xff] %vm122, %v121
  %124 = vst.msk [vmem:[%s4 + $0x8] sm:$0xff] %vm122, %v114
  %125 = vst.msk [vmem:[%s4 + $0x10] sm:$0xff] %vm122, %v115
  // Predicated region
  $region18: #{condition_embedding.1} parent=0 // pred_check
    _
  $region19: #{condition_embedding.1} parent=0 // pred_check_branch
    %127 = sbr.rel (0) target = $region21
  $region20: #{condition_embedding.1} parent=0 // pred_region
    _
  $region21: #{condition_embedding.1} parent=0 // pred_fallthru
    _
  // Predicated region
  $region22: #{condition_embedding.1} parent=0 // pred_check
    _
  $region23: #{condition_embedding.1} parent=0 // pred_check_branch
    %129 = sbr.rel (0) target = $region25
  $region24: #{condition_embedding.1} parent=0 // pred_region
    _
  $region25: #{condition_embedding.1} parent=0 // pred_fallthru
    _

</llo_original>
